<compile_context>
chip_gen: v7x
topology: tpu7x:2x2x1
jax: 0.10.0
libtpu: 0.0.40
codegen_flags: <defaults>
</compile_context>

<pallas_src>
import dataclasses
import functools

import jax
import jax.numpy as jnp
from jax.experimental import pallas as pl
from jax.experimental.pallas import tpu as pltpu


@dataclasses.dataclass(frozen=True)
class BoundingConfig:
    strategy: str = "sigmoid"
    min_value: float = 0.0
    max_value: float = 1.0

    @property
    def value_range(self) -> float:
        return self.max_value - self.min_value


# ---------------- Pallas kernels (elementwise hot path) ----------------

def _sigmoid_bound_kernel(x_ref, o_ref, *, min_value, value_range):
    # Transcendental in f32 (EUP path), fused scale+shift, cast back.
    xf = x_ref[...].astype(jnp.float32)
    sig = jax.lax.logistic(xf)
    o_ref[...] = (min_value + sig * value_range).astype(o_ref.dtype)


def _clamp_bound_kernel(x_ref, o_ref, *, min_value, max_value):
    # Clamp natively in the input dtype (exact; no upcast needed).
    x = x_ref[...]
    o_ref[...] = jnp.clip(x, min_value, max_value).astype(o_ref.dtype)


# ---------------- Tiling helpers ----------------

_LANE = 128


def _vmem_capacity_bytes() -> int:
    """Per-TensorCore VMEM capacity; conservative fallback if query fails."""
    try:
        return int(pltpu.get_tpu_info().vmem_capacity_bytes)
    except Exception:
        return 64 << 20  # v7x per-TC size (smallest of v5e/v6e/v7x)


def _sublane_packing(dtype) -> int:
    """Rows per packed sublane group: 8 for 32-bit, 16 for bf16, 32 for int8."""
    itemsize = jnp.dtype(dtype).itemsize
    return max(1, 32 // (itemsize * 8)) * 8


def _pick_lane_width(total: int) -> tuple[int, int]:
    """Lane-dense slab width L (multiple of 128) and padded total element count."""
    for cand in (4096, 2048, 1024, 512, 256, _LANE):
        if total % cand == 0:
            return cand, total
    cand = 1024 if total >= 1024 else _LANE
    padded = ((total + cand - 1) // cand) * cand
    return cand, padded


def _round_down(v: int, m: int) -> int:
    return max(m, (v // m) * m)


def _choose_block_rows(R: int, L: int, dtype, vmem_cap: int,
                       block_rows=None) -> int:
    itemsize = jnp.dtype(dtype).itemsize
    packing = _sublane_packing(dtype)
    row_bytes = L * itemsize

    # Hard cap: 2x-in + 2x-out double buffers + slack must fit ~90% of VMEM,
    # including when the caller passes an explicit block_rows (v7x: 64 MiB/TC).
    slack = 4 << 20
    max_tile_bytes = max((int(0.9 * vmem_cap) - slack) // 4, packing * row_bytes)
    hard_max_rows = _round_down(max_tile_bytes // row_bytes, packing)

    if block_rows is None:
        # 2-4 MiB tiles already reach ~85% of HBM roofline; keeping them small
        # leaves enough grid steps for read/write overlap and (v7x) TC sharding.
        tile_budget = (2 << 20) if vmem_cap <= (64 << 20) else (4 << 20)
        block_rows = _round_down(tile_budget // row_bytes, packing)
        if R >= 8 * packing:          # prefer >= ~8 grid steps
            block_rows = min(block_rows, _round_down(R // 8, packing))
        elif R >= 2 * packing:        # at least 2 steps (v7x: feed both TCs)
            block_rows = min(block_rows, _round_down(R // 2, packing))

    block_rows = min(int(block_rows), hard_max_rows)
    if block_rows >= R:
        return R  # full-extent block is always legal
    return min(_round_down(block_rows, packing), R)


# ---------------- Wrapper ----------------

def bounder(x: jax.Array, config: BoundingConfig,
            *, block_rows: int | None = None,
            alias_input: bool = False) -> jax.Array:
    """Applies the Bounder forward pass via a lane-dense Pallas TPU kernel.

    Elementwise op, so the input is reflattened to a (rows, L) slab with L a
    multiple of 128 (fully lane-utilized vregs, unmasked stores), streamed in
    small row tiles over a 1-D "parallel" grid, and reshaped back.
    """
    if config.strategy == "none":
        return x  # identity: skip the HBM round trip entirely

    if config.strategy == "sigmoid":
        kernel = functools.partial(
            _sigmoid_bound_kernel,
            min_value=float(config.min_value),
            value_range=float(config.value_range),
        )
    elif config.strategy == "clamp":
        kernel = functools.partial(
            _clamp_bound_kernel,
            min_value=float(config.min_value),
            max_value=float(config.max_value),
        )
    else:
        raise ValueError(f"Unknown strategy: {config.strategy}")

    orig_shape = x.shape
    total = x.size
    if total == 0:
        return x

    # Lane-dense reflatten (+ zero pad for totals not divisible by 128;
    # padded lanes are computed and discarded, which is safe elementwise).
    L, padded_total = _pick_lane_width(total)
    flat = x.reshape(-1)
    if padded_total != total:
        flat = jnp.pad(flat, (0, padded_total - total))
    x2 = flat.reshape(padded_total // L, L)
    R = x2.shape[0]

    vmem_cap = _vmem_capacity_bytes()
    br = _choose_block_rows(R, L, x2.dtype, vmem_cap, block_rows)
    tile_bytes = br * L * jnp.dtype(x2.dtype).itemsize
    vmem_limit = max(16 << 20,
                     min(int(0.9 * vmem_cap), 4 * tile_bytes + (8 << 20)))

    grid = (pl.cdiv(R, br),)  # ragged last row-block handled by Pallas

    out2 = pl.pallas_call(
        kernel,
        out_shape=jax.ShapeDtypeStruct((R, L), x2.dtype),
        grid_spec=pltpu.PrefetchScalarGridSpec(
            num_scalar_prefetch=0,
            grid=grid,
            in_specs=[pl.BlockSpec((br, L), lambda i: (i, 0))],
            out_specs=pl.BlockSpec((br, L), lambda i: (i, 0)),
        ),
        compiler_params=pltpu.CompilerParams(
            dimension_semantics=("parallel",),  # shards rows across TCs on v7x
            vmem_limit_bytes=vmem_limit,
        ),
        input_output_aliases=({0: 0} if alias_input else {}),
    )(x2)

    out_flat = out2.reshape(-1)
    if padded_total != total:
        out_flat = out_flat[:total]
    return out_flat.reshape(orig_shape)


# ---------------- Reference (plain JAX, mirrors the PyTorch forward) ----------------

def bounder_ref(x, config: BoundingConfig):
    if config.strategy == "sigmoid":
        return config.min_value + jax.nn.sigmoid(x) * config.value_range
    elif config.strategy == "clamp":
        return jnp.clip(x, config.min_value, config.max_value)
    elif config.strategy == "none":
        return x
    else:
        raise ValueError(f"Unknown strategy: {config.strategy}")


if __name__ == "__main__":
    key = jax.random.PRNGKey(0)
    k1, k2, k3, k4, k5 = jax.random.split(key, 5)

    # Small deterministic inputs consistent with an elementwise bounding op.
    x_4d = jax.random.normal(k1, (2, 4, 16, 32), dtype=jnp.float32) * 3.0   # total 4096
    x_2d = jax.random.normal(k2, (256, 1024), dtype=jnp.float32) * 3.0      # multi-step grid
    x_ragged = jax.random.normal(k3, (37, 300), dtype=jnp.float32) * 3.0    # padded path
    x_rows = jax.random.normal(k4, (200, 512), dtype=jnp.float32) * 3.0     # ragged row-grid
    x_1d = jax.random.normal(k5, (8200,), dtype=jnp.float32) * 3.0          # 1-D, padded path
    x_bf16 = (jax.random.normal(k1, (48, 256), dtype=jnp.float32) * 3.0
              ).astype(jnp.bfloat16)

    cfg_sig = BoundingConfig(strategy="sigmoid", min_value=-2.0, max_value=5.0)
    cfg_clamp = BoundingConfig(strategy="clamp", min_value=-1.0, max_value=1.0)
    cfg_none = BoundingConfig(strategy="none")

    tests = [
        (x_4d, cfg_sig, None),
        (x_4d, cfg_clamp, None),
        (x_4d, cfg_none, None),
        (x_2d, cfg_sig, None),       # auto tiling -> ~8-step grid
        (x_2d, cfg_clamp, 16),       # explicit block_rows
        (x_ragged, cfg_sig, None),
        (x_ragged, cfg_clamp, None),
        (x_rows, cfg_clamp, 8),      # ragged last row-block (25 % 8 != 0)
        (x_1d, cfg_sig, None),
        (x_bf16, cfg_clamp, None),
        (x_bf16, cfg_sig, None),
    ]

    for x, cfg, br in tests:
        out = jax.block_until_ready(bounder(x, cfg, block_rows=br))
        ref = bounder_ref(x, cfg)
        assert out.shape == ref.shape and out.dtype == ref.dtype, cfg.strategy
        tol = 5e-2 if x.dtype == jnp.bfloat16 else 1e-5
        assert jnp.allclose(out.astype(jnp.float32), ref.astype(jnp.float32),
                            atol=tol, rtol=tol), cfg.strategy

    # input/output aliasing path (donated input under jit).
    f_alias = jax.jit(lambda a: bounder(a, cfg_sig, alias_input=True),
                      donate_argnums=0)
    x_donate = jnp.array(x_2d)  # fresh copy we can donate
    out = jax.block_until_ready(f_alias(x_donate))
    ref = bounder_ref(x_2d, cfg_sig)
    assert jnp.allclose(out, ref, atol=1e-5, rtol=1e-5), "alias"

    print("KERNEL_OK")
</pallas_src>

<mosaic_0001>
module attributes {stable_mosaic.version = 11 : i64} {
  func.func @_sigmoid_bound_kernel(%arg0: i32, %arg1: memref<1x4096xf32, #tpu.memory_space<vmem>>, %arg2: memref<1x4096xf32, #tpu.memory_space<vmem>>) attributes {dimension_semantics = [#tpu.dimension_semantics<parallel>], iteration_bounds = array<i64: 1>, scalar_prefetch = 0 : i64, scratch_operands = 0 : i64, tpu.core_type = #tpu.core_type<tc>, window_params = [{transform_indices = @transform_0, window_bounds = array<i64: 1, 4096>}, {transform_indices = @transform_1, window_bounds = array<i64: 1, 4096>}]} {
    %c0 = arith.constant 0 : index
    %c0_0 = arith.constant 0 : index
    %0 = vector.load %arg1[%c0, %c0_0] : memref<1x4096xf32, #tpu.memory_space<vmem>>, vector<1x4096xf32>
    %1 = arith.negf %0 : vector<1x4096xf32>
    %2 = math.exp %1 : vector<1x4096xf32>
    %cst = arith.constant 1.000000e+00 : f32
    %3 = vector.broadcast %cst : f32 to vector<1x4096xf32>
    %4 = arith.addf %3, %2 : vector<1x4096xf32>
    %5 = arith.divf %3, %4 : vector<1x4096xf32>
    %cst_1 = arith.constant 7.000000e+00 : f32
    %6 = vector.broadcast %cst_1 : f32 to vector<1x4096xf32>
    %7 = arith.mulf %5, %6 : vector<1x4096xf32>
    %cst_2 = arith.constant -2.000000e+00 : f32
    %8 = vector.broadcast %cst_2 : f32 to vector<1x4096xf32>
    %9 = arith.addf %8, %7 : vector<1x4096xf32>
    %c0_3 = arith.constant 0 : index
    %c0_4 = arith.constant 0 : index
    %10 = vector.load %arg2[%c0_3, %c0_4] : memref<1x4096xf32, #tpu.memory_space<vmem>>, vector<1x4096xf32>
    tpu.vector_store %arg2[%c0_3, %c0_4], %9 {strides = array<i32>} : memref<1x4096xf32, #tpu.memory_space<vmem>>, vector<1x4096xf32>,
    return
  }
  func.func @transform_0(%arg0: i32) -> (i32, i32) {
    %c0_i32 = arith.constant 0 : i32
    %c0_i32_0 = arith.constant 0 : i32
    return %arg0, %c0_i32 : i32, i32
  }
  func.func @transform_1(%arg0: i32) -> (i32, i32) {
    %c0_i32 = arith.constant 0 : i32
    %c0_i32_0 = arith.constant 0 : i32
    return %arg0, %c0_i32 : i32, i32
  }
}

</mosaic_0001>

<llo_original>
// kernel: tpu_custom_call.1
$region0: #{tpu_custom_call.1}
  #allocation0 [shape = 'u32[]', space=smem, size = 0x4, offset = 0x4, fixed_abs, tag = 'smem constant byte address 0x4 - core index']
  #allocation1 [shape = 'u32[144,128]{1,0:T(1,128)}', space=vmem, size = 0x12000, scoped, tag = 'internal scratch']
  %s0 = inlined_call_operand.hbm [shape: f32[1,4096], index: 0, kind: input, shape index: {}]
  %s1 = inlined_call_operand.hbm [shape: f32[1,4096], index: 1, kind: output, shape index: {}]
  %s2 = sld [smem:[#allocation0]]
  $region18: #{tpu_custom_call.1} parent=0
    _
  %s4 = ssub.s32 1, %s2
  %s5 = scalar_select 0, %s4, %s2
  $region1: #{tpu_custom_call.1} parent=0
    #allocation2 [shape = 'u8[16384]{0}', space=vmem, size = 0x4000, scoped, tag = 'input window, operand 0, single buffered']
    #allocation3 [shape = 's32[1]{0}', space=sflag, size = 0x4, scoped, tag = 'scoped memory for tpu_custom_call.1']
    #allocation4 [shape = 's32[1]{0}', space=sflag, size = 0x4, scoped, tag = 'scoped memory for tpu_custom_call.1']
    #allocation5 [shape = 'u8[16384]{0}', space=vmem, size = 0x4000, scoped, tag = 'output window, operand 0, single buffered']
    %6 = vsyncpa [#allocation3], 0
    %7 = vsyncpa [#allocation4], 0
    // Predicated region
    $region2: #{tpu_custom_call.1} parent=1 // pred_check
      _
    $region3: #{tpu_custom_call.1} parent=1 // pred_check_branch
      %9 = sbr.rel (0) target = $region5
    $region4: #{tpu_custom_call.1} parent=1 // pred_region
      %s11 = ssub.s32 512, 512
      %12 = vsyncadd [#allocation3], %s11
      %s14 = sshll.u32 [#allocation2], 4
      %s15 = int_to_ptr.vmem [resolvable:$true] %s14
      %17 = dma.hbm_to_vmem [thread:$0]  %s0, 512, %s15, [#allocation3]
    $region5: #{tpu_custom_call.1} parent=1 // pred_fallthru
      _
    // Predicated region
    $region6: #{tpu_custom_call.1} parent=1 // pred_check
      _
    $region7: #{tpu_custom_call.1} parent=1 // pred_check_branch
      %19 = sbr.rel (0) target = $region9
    $region8: #{tpu_custom_call.1} parent=1 // pred_region
      %20 = dma.done [#allocation3], 512
    $region9: #{tpu_custom_call.1} parent=1 // pred_fallthru
      _
    %v21 = vld [vmem:[#allocation2] sm:$0xff]
    %v22 = vld [vmem:[#allocation2 + $0x8] sm:$0xff]
    %v23 = vld [vmem:[#allocation2 + $0x10] sm:$0xff]
    %v24 = vld [vmem:[#allocation2 + $0x18] sm:$0xff]
    %v25 = vxor.u32 %v21, 2147483648
    %v26 = vxor.u32 %v22, 2147483648
    %v27 = vxor.u32 %v23, 2147483648
    %v28 = vxor.u32 %v24, 2147483648
    %v29 = vmul.f32 %v25, 1.442695
    %v30 = vpow.pop %v29
    %v31 = vmul.f32 %v26, 1.442695
    %v32 = vpow.pop %v31
    %v33 = vmul.f32 %v27, 1.442695
    %v34 = vpow.pop %v33
    %v35 = vmul.f32 %v28, 1.442695
    %v36 = vpow.pop %v35
    %v37 = vadd.f32 %v30, 1.0
    %v38 = vadd.f32 %v32, 1.0
    %v39 = vadd.f32 %v34, 1.0
    %v40 = vadd.f32 %v36, 1.0
    %v41 = vrcp.pop %v37
    %v42 = vmul.f32 1.0, %v41
    %v43 = vrcp.pop %v38
    %v44 = vmul.f32 1.0, %v43
    %v45 = vrcp.pop %v39
    %v46 = vmul.f32 1.0, %v45
    %v47 = vrcp.pop %v40
    %v48 = vmul.f32 1.0, %v47
    %v49 = vmul.f32 %v42, 7.0
    %v50 = vmul.f32 %v44, 7.0
    %v51 = vmul.f32 %v46, 7.0
    %v52 = vmul.f32 %v48, 7.0
    %v53 = vadd.f32 %v49, -2.0
    %v54 = vadd.f32 %v50, -2.0
    %v55 = vadd.f32 %v51, -2.0
    %v56 = vadd.f32 %v52, -2.0
    %57 = vst [vmem:[#allocation5] sm:$0xff] %v53
    %58 = vst [vmem:[#allocation5 + $0x8] sm:$0xff] %v54
    %59 = vst [vmem:[#allocation5 + $0x10] sm:$0xff] %v55
    %60 = vst [vmem:[#allocation5 + $0x18] sm:$0xff] %v56
    // Predicated region
    $region10: #{tpu_custom_call.1} parent=1 // pred_check
      _
    $region11: #{tpu_custom_call.1} parent=1 // pred_check_branch
      %62 = sbr.rel (0) target = $region13
    $region12: #{tpu_custom_call.1} parent=1 // pred_region
      %s64 = ssub.s32 512, 512
      %65 = vsyncadd [#allocation4], %s64
      %s67 = sshll.u32 [#allocation5], 4
      %s68 = int_to_ptr.vmem [resolvable:$true] %s67
      %70 = dma.vmem_to_hbm [thread:$0]  %s68, 512, %s1, [#allocation4]
    $region13: #{tpu_custom_call.1} parent=1 // pred_fallthru
      _
    // Predicated region
    $region14: #{tpu_custom_call.1} parent=1 // pred_check
      _
    $region15: #{tpu_custom_call.1} parent=1 // pred_check_branch
      %72 = sbr.rel (0) target = $region17
    $region16: #{tpu_custom_call.1} parent=1 // pred_region
      %73 = dma.done [#allocation4], 512
    $region17: #{tpu_custom_call.1} parent=1 // pred_fallthru
      _
    %74 = vsyncpa [#allocation3], 1
    %75 = vsyncpa [#allocation4], 1

</llo_original>
